<compile_context>
chip_gen: v6e
topology: v6e:2x2x1
jax: 0.10.0
libtpu: 0.0.40
codegen_flags: <defaults>
</compile_context>

<pallas_src>
import jax
import jax.numpy as jnp
import numpy as np
from jax.experimental import pallas as pl
from jax.experimental.pallas import tpu as pltpu

EPS = 1e-5          # BatchNorm eps (PyTorch default)
NEG_SLOPE = 0.2     # GraphLayer leaky-relu slope (GDN / GAT default)
NEG_INF = -1e30     # masked-softmax fill


# --------------------------- fused Pallas kernel -----------------------------

def _gdn_fused_kernel(x_ref, w_ref, emb_ref, idx_ref, attn_ref, bn_ref,
                      bout_ref, o_ref):
    """One batch item per grid step (grid=(B,), "parallel").

    projection (MXU) -> attention scores as 4 MXU matvecs -> in-kernel top-k
    mask (broadcasted_iota vs int32 index table) -> masked softmax ->
    aggregation matmul (MXU) -> folded BN/ReLU tail -> OutLayer as a
    (1,D)x(N,D)^T matmul producing a lane-dense (1, N) output row.
    """
    n = emb_ref.shape[0]
    x = jnp.dot(x_ref[0], w_ref[...], preferred_element_type=jnp.float32)  # (N, D)
    emb = emb_ref[...]                                                     # (N, D)

    a_i_x = attn_ref[0:1, :]
    a_i_e = attn_ref[1:2, :]
    a_j_x = attn_ref[2:3, :]
    a_j_e = attn_ref[3:4, :]
    bias_g = attn_ref[4:5, :]
    w_out = attn_ref[5:6, :]

    # Contract the last dims of both operands (A @ B^T) -> runs on the MXU,
    # keeps the XLU free for the softmax reductions.
    dn = (((1,), (1,)), ((), ()))
    si = (jax.lax.dot_general(x, a_i_x, dn, preferred_element_type=jnp.float32)
          + jax.lax.dot_general(emb, a_i_e, dn,
                                preferred_element_type=jnp.float32))       # (N, 1)
    sj = (jax.lax.dot_general(a_j_x, x, dn, preferred_element_type=jnp.float32)
          + jax.lax.dot_general(a_j_e, emb, dn,
                                preferred_element_type=jnp.float32))       # (1, N)
    s = si + sj                                                            # (N, N)
    s = jnp.where(s >= 0, s, NEG_SLOPE * s)                                # leaky relu

    # Neighbour mask built in-kernel from the int32 top-k index table.
    idx = idx_ref[...]                                                     # (N, K)
    col = jax.lax.broadcasted_iota(jnp.int32, (n, n), 1)
    mask = col == idx[:, 0:1]
    for k in range(1, idx.shape[1]):          # K is small and static
        mask = jnp.logical_or(mask, col == idx[:, k:k + 1])

    # Masked softmax over the k neighbours (every row has >= 1 neighbour,
    # so the denominator is never zero).
    s = jnp.where(mask, s, NEG_INF)
    s = s - jnp.max(s, axis=-1, keepdims=True)
    p = jnp.exp(s)                            # NEG_INF entries underflow to 0
    alpha = p / jnp.sum(p, axis=-1, keepdims=True)                         # (N, N)

    # Aggregation as a selection matmul on the MXU.
    gcn = jnp.dot(alpha, x, preferred_element_type=jnp.float32) + bias_g   # (N, D)

    # Fused tail: GNNLayer.bn + relu -> * embedding -> bn_outlayer_in + relu
    # -> (dropout = identity in eval) -> OutLayer Linear(D, 1).
    s1, t1 = bn_ref[0:1, :], bn_ref[1:2, :]   # folded BN1 scale / shift
    s2, t2 = bn_ref[2:3, :], bn_ref[3:4, :]   # folded BN2 scale / shift
    h = jnp.maximum(gcn * s1 + t1, 0.0)
    h = h * emb
    h = jnp.maximum(h * s2 + t2, 0.0)

    # OutLayer Linear(D, 1) as a (1,D) @ (N,D)^T matmul -> lane-dense row.
    out_row = jax.lax.dot_general(w_out, h, dn,
                                  preferred_element_type=jnp.float32)      # (1, N)
    o_ref[...] = (out_row + bout_ref[0, 0])[None]                          # (1, 1, N)


# --------------------------- pallas_call wrapper ------------------------------

def gdn_fused(batch_tensor, w_lin, emb, topk_idx, attn_pack, bn_pack, b_out):
    B, N, F = batch_tensor.shape
    D = emb.shape[1]
    K = topk_idx.shape[1]
    out3 = pl.pallas_call(
        _gdn_fused_kernel,
        out_shape=jax.ShapeDtypeStruct((B, 1, N), jnp.float32),
        grid=(B,),
        in_specs=[
            pl.BlockSpec((1, N, F), lambda b: (b, 0, 0)),       # batch row
            pl.BlockSpec((F, D), lambda b: (0, 0)),             # w_lin (resident)
            pl.BlockSpec((N, D), lambda b: (0, 0)),             # embeddings
            pl.BlockSpec((N, K), lambda b: (0, 0)),             # top-k indices
            pl.BlockSpec((6, D), lambda b: (0, 0)),             # packed attn vecs
            pl.BlockSpec((4, D), lambda b: (0, 0)),             # folded BN params
            pl.BlockSpec(memory_space=pltpu.MemorySpace.SMEM),  # scalar out bias
        ],
        out_specs=pl.BlockSpec((1, 1, N), lambda b: (b, 0, 0)),  # lane-dense row
        compiler_params=pltpu.CompilerParams(
            dimension_semantics=("parallel",)),
    )(batch_tensor, w_lin, emb, topk_idx, attn_pack, bn_pack, b_out)
    return out3.reshape(B, N)      # torch: out.view(-1, node_num)


# ------------------------------ GDN forward ----------------------------------

def build_graph(emb, topk):
    # Parameter-only: the learned graph depends only on the embeddings, so at
    # inference this (matmul + top_k) can be computed once and cached across
    # forward calls. Uses the exact same normalisation as the reference so
    # top-k tie-breaking is bit-identical.
    nrm = jnp.sqrt(jnp.sum(emb * emb, axis=-1, keepdims=True))
    cos = (emb @ emb.T) / (nrm * nrm.T)
    return jax.lax.top_k(cos, topk)[1].astype(jnp.int32)       # (N, K)


def gdn_forward(params, batch_tensor, topk):
    emb = params["embedding"]                                  # (N, D)
    topk_idx = build_graph(emb, topk)

    # Pack tiny parameter vectors into single VMEM blocks.
    attn_pack = jnp.concatenate(
        [params["a_i_x"], params["a_i_e"], params["a_j_x"], params["a_j_e"],
         params["bias_g"], params["w_out"]], axis=0)           # (6, D)

    def fold_bn(bn):                                           # (4, D) -> (2, D)
        g, b, rm, rv = bn
        scale = g * jax.lax.rsqrt(rv + EPS)
        return jnp.stack([scale, b - rm * scale])

    bn_pack = jnp.concatenate(
        [fold_bn(params["bn1"]), fold_bn(params["bn2"])], axis=0)   # (4, D)

    return gdn_fused(batch_tensor, params["w_lin"], emb, topk_idx,
                     attn_pack, bn_pack, params["b_out"])


# -------------------------- pure-JAX reference --------------------------------

def gdn_reference(params, batch_tensor, topk):
    B, N, F = batch_tensor.shape
    emb = params["embedding"]
    nrm = jnp.sqrt(jnp.sum(emb * emb, axis=-1, keepdims=True))
    cos = (emb @ emb.T) / (nrm * nrm.T)
    topk_idx = jax.lax.top_k(cos, topk)[1]

    x = (batch_tensor.reshape(-1, F) @ params["w_lin"]).reshape(B, N, -1)
    xj = jnp.take(x, topk_idx, axis=1)
    embj = jnp.take(emb, topk_idx, axis=0)
    si = jnp.sum(x * params["a_i_x"][0], -1) + jnp.sum(emb * params["a_i_e"][0], -1)
    sj = jnp.sum(xj * params["a_j_x"][0], -1) + jnp.sum(embj * params["a_j_e"][0], -1)
    s = si[..., None] + sj
    s = jnp.where(s >= 0, s, NEG_SLOPE * s)
    alpha = jax.nn.softmax(s, axis=-1)
    gcn = jnp.sum(alpha[..., None] * xj, axis=2) + params["bias_g"][0]

    g1, b1, rm1, rv1 = params["bn1"]
    g2, b2, rm2, rv2 = params["bn2"]
    h = jnp.maximum((gcn - rm1) / jnp.sqrt(rv1 + EPS) * g1 + b1, 0.0)
    h = h * emb
    h = jnp.maximum((h - rm2) / jnp.sqrt(rv2 + EPS) * g2 + b2, 0.0)
    out = jnp.sum(h * params["w_out"][0], -1) + params["b_out"][0, 0]
    return out.reshape(-1, N)


# ------------------------------ params / main ---------------------------------

def init_params(key, node_num, input_dim, embed_dim):
    ks = jax.random.split(key, 10)
    f32 = jnp.float32

    def bn(k):
        k1, k2, k3, k4 = jax.random.split(k, 4)
        gamma = jax.random.uniform(k1, (embed_dim,), f32, 0.5, 1.5)
        beta = jax.random.normal(k2, (embed_dim,), f32) * 0.1
        rmean = jax.random.normal(k3, (embed_dim,), f32) * 0.1
        rvar = jax.random.uniform(k4, (embed_dim,), f32, 0.5, 1.5)
        return jnp.stack([gamma, beta, rmean, rvar])           # (4, D)

    ko1, ko2 = jax.random.split(ks[9])
    return {
        "embedding": jax.random.normal(ks[0], (node_num, embed_dim), f32),
        "w_lin": jax.random.normal(ks[1], (input_dim, embed_dim), f32)
                 / jnp.sqrt(float(input_dim)),
        "a_i_x": jax.random.normal(ks[2], (1, embed_dim), f32) * 0.1,
        "a_i_e": jax.random.normal(ks[3], (1, embed_dim), f32) * 0.1,
        "a_j_x": jax.random.normal(ks[4], (1, embed_dim), f32) * 0.1,
        "a_j_e": jax.random.normal(ks[5], (1, embed_dim), f32) * 0.1,
        "bias_g": jax.random.normal(ks[6], (1, embed_dim), f32) * 0.1,
        "bn1": bn(ks[7]),
        "bn2": bn(ks[8]),
        "w_out": jax.random.normal(ko1, (1, embed_dim), f32)
                 / jnp.sqrt(float(embed_dim)),
        "b_out": jax.random.normal(ko2, (1, 1), f32) * 0.1,
    }


if __name__ == "__main__":
    B, N, F, D, TOPK = 2, 16, 10, 64, 4   # batch, node_num, input_dim, embed_dim, topk

    key = jax.random.PRNGKey(0)
    k_params, k_x = jax.random.split(key)
    params = init_params(k_params, N, F, D)
    batch_tensor = jax.random.normal(k_x, (B, N, F), jnp.float32)

    out = jax.block_until_ready(gdn_forward(params, batch_tensor, TOPK))
    assert out.shape == (B, N), out.shape

    ref = jax.block_until_ready(gdn_reference(params, batch_tensor, TOPK))
    np.testing.assert_allclose(np.asarray(out), np.asarray(ref),
                               rtol=1e-3, atol=1e-3)
    print("KERNEL_OK")
</pallas_src>

<mosaic_0001>
module attributes {stable_mosaic.version = 11 : i64} {
  func.func @_gdn_fused_kernel(%arg0: i32, %arg1: memref<1x16x10xf32, #tpu.memory_space<vmem>>, %arg2: memref<10x64xf32, #tpu.memory_space<vmem>>, %arg3: memref<16x64xf32, #tpu.memory_space<vmem>>, %arg4: memref<16x4xi32, #tpu.memory_space<vmem>>, %arg5: memref<6x64xf32, #tpu.memory_space<vmem>>, %arg6: memref<4x64xf32, #tpu.memory_space<vmem>>, %arg7: memref<1x1xf32, #tpu.memory_space<smem>>, %arg8: memref<1x1x16xf32, #tpu.memory_space<vmem>>) attributes {dimension_semantics = [#tpu.dimension_semantics<parallel>], iteration_bounds = array<i64: 2>, scalar_prefetch = 0 : i64, scratch_operands = 0 : i64, tpu.core_type = #tpu.core_type<tc>, window_params = [{transform_indices = @transform_0, window_bounds = array<i64: 1, 16, 10>}, {pipeline_mode = #tpu.pipeline_mode<synchronous>, transform_indices = @transform_1, window_bounds = array<i64: 10, 64>}, {pipeline_mode = #tpu.pipeline_mode<synchronous>, transform_indices = @transform_2, window_bounds = array<i64: 16, 64>}, {pipeline_mode = #tpu.pipeline_mode<synchronous>, transform_indices = @transform_3, window_bounds = array<i64: 16, 4>}, {pipeline_mode = #tpu.pipeline_mode<synchronous>, transform_indices = @transform_4, window_bounds = array<i64: 6, 64>}, {pipeline_mode = #tpu.pipeline_mode<synchronous>, transform_indices = @transform_5, window_bounds = array<i64: 4, 64>}, {transform_indices = @transform_6, window_bounds = array<i64: 1, 1>}, {transform_indices = @transform_7, window_bounds = array<i64: 1, 1, 16>}]} {
    %c0 = arith.constant 0 : index
    %c0_0 = arith.constant 0 : index
    %c0_1 = arith.constant 0 : index
    %0 = vector.load %arg1[%c0, %c0_0, %c0_1] : memref<1x16x10xf32, #tpu.memory_space<vmem>>, vector<1x16x10xf32>
    %1 = vector.shape_cast %0 : vector<1x16x10xf32> to vector<16x10xf32>
    %c0_2 = arith.constant 0 : index
    %c0_3 = arith.constant 0 : index
    %2 = vector.load %arg2[%c0_2, %c0_3] : memref<10x64xf32, #tpu.memory_space<vmem>>, vector<10x64xf32>
    %cst = arith.constant dense<0.000000e+00> : vector<16x64xf32>
    %3 = tpu.matmul %1, %2, %cst {dimension_numbers = #tpu.dot_dimension_numbers<[1], [0], [0], [1], [0, 0, 1, 1], [], []>} : vector<16x10xf32>, vector<10x64xf32>, vector<16x64xf32> -> vector<16x64xf32>
    %c0_4 = arith.constant 0 : index
    %c0_5 = arith.constant 0 : index
    %4 = vector.load %arg3[%c0_4, %c0_5] : memref<16x64xf32, #tpu.memory_space<vmem>>, vector<16x64xf32>
    %c0_6 = arith.constant 0 : index
    %c0_7 = arith.constant 0 : index
    %5 = vector.load %arg5[%c0_6, %c0_7] : memref<6x64xf32, #tpu.memory_space<vmem>>, vector<1x64xf32>
    %c1 = arith.constant 1 : index
    %c0_8 = arith.constant 0 : index
    %6 = vector.load %arg5[%c1, %c0_8] : memref<6x64xf32, #tpu.memory_space<vmem>>, vector<1x64xf32>
    %c2 = arith.constant 2 : index
    %c0_9 = arith.constant 0 : index
    %7 = vector.load %arg5[%c2, %c0_9] : memref<6x64xf32, #tpu.memory_space<vmem>>, vector<1x64xf32>
    %c3 = arith.constant 3 : index
    %c0_10 = arith.constant 0 : index
    %8 = vector.load %arg5[%c3, %c0_10] : memref<6x64xf32, #tpu.memory_space<vmem>>, vector<1x64xf32>
    %c4 = arith.constant 4 : index
    %c0_11 = arith.constant 0 : index
    %9 = vector.load %arg5[%c4, %c0_11] : memref<6x64xf32, #tpu.memory_space<vmem>>, vector<1x64xf32>
    %c5 = arith.constant 5 : index
    %c0_12 = arith.constant 0 : index
    %10 = vector.load %arg5[%c5, %c0_12] : memref<6x64xf32, #tpu.memory_space<vmem>>, vector<1x64xf32>
    %cst_13 = arith.constant dense<0.000000e+00> : vector<16x1xf32>
    %11 = tpu.matmul %3, %5, %cst_13 {dimension_numbers = #tpu.dot_dimension_numbers<[1], [1], [0], [0], [0, 0, 1, 0], [], []>} : vector<16x64xf32>, vector<1x64xf32>, vector<16x1xf32> -> vector<16x1xf32>
    %cst_14 = arith.constant dense<0.000000e+00> : vector<16x1xf32>
    %12 = tpu.matmul %4, %6, %cst_14 {dimension_numbers = #tpu.dot_dimension_numbers<[1], [1], [0], [0], [0, 0, 1, 0], [], []>} : vector<16x64xf32>, vector<1x64xf32>, vector<16x1xf32> -> vector<16x1xf32>
    %13 = arith.addf %11, %12 : vector<16x1xf32>
    %cst_15 = arith.constant dense<0.000000e+00> : vector<1x16xf32>
    %14 = tpu.matmul %7, %3, %cst_15 {dimension_numbers = #tpu.dot_dimension_numbers<[1], [1], [0], [0], [0, 0, 1, 0], [], []>} : vector<1x64xf32>, vector<16x64xf32>, vector<1x16xf32> -> vector<1x16xf32>
    %cst_16 = arith.constant dense<0.000000e+00> : vector<1x16xf32>
    %15 = tpu.matmul %8, %4, %cst_16 {dimension_numbers = #tpu.dot_dimension_numbers<[1], [1], [0], [0], [0, 0, 1, 0], [], []>} : vector<1x64xf32>, vector<16x64xf32>, vector<1x16xf32> -> vector<1x16xf32>
    %16 = arith.addf %14, %15 : vector<1x16xf32>
    %17 = vector.broadcast %13 : vector<16x1xf32> to vector<16x16xf32>
    %18 = vector.broadcast %16 : vector<1x16xf32> to vector<16x16xf32>
    %19 = arith.addf %17, %18 : vector<16x16xf32>
    %cst_17 = arith.constant 0.000000e+00 : f32
    %20 = vector.broadcast %cst_17 : f32 to vector<16x16xf32>
    %21 = arith.cmpf oge, %19, %20 : vector<16x16xf32>
    %cst_18 = arith.constant 2.000000e-01 : f32
    %22 = vector.broadcast %cst_18 : f32 to vector<16x16xf32>
    %23 = arith.mulf %22, %19 : vector<16x16xf32>
    %24 = arith.select %21, %19, %23 : vector<16x16xi1>, vector<16x16xf32>
    %c0_19 = arith.constant 0 : index
    %c0_20 = arith.constant 0 : index
    %25 = vector.load %arg4[%c0_19, %c0_20] : memref<16x4xi32, #tpu.memory_space<vmem>>, vector<16x4xi32>
    %26 = tpu.iota {dimensions = array<i32: 1>} : vector<16x16xi32>
    %27 = vector.extract_strided_slice %25 {offsets = [0, 0], sizes = [16, 1], strides = [1, 1]} : vector<16x4xi32> to vector<16x1xi32>
    %28 = vector.broadcast %27 : vector<16x1xi32> to vector<16x16xi32>
    %29 = arith.cmpi eq, %26, %28 : vector<16x16xi32>
    %30 = vector.extract_strided_slice %25 {offsets = [0, 1], sizes = [16, 1], strides = [1, 1]} : vector<16x4xi32> to vector<16x1xi32>
    %31 = vector.broadcast %30 : vector<16x1xi32> to vector<16x16xi32>
    %32 = arith.cmpi eq, %26, %31 : vector<16x16xi32>
    %33 = arith.ori %29, %32 : vector<16x16xi1>
    %34 = vector.extract_strided_slice %25 {offsets = [0, 2], sizes = [16, 1], strides = [1, 1]} : vector<16x4xi32> to vector<16x1xi32>
    %35 = vector.broadcast %34 : vector<16x1xi32> to vector<16x16xi32>
    %36 = arith.cmpi eq, %26, %35 : vector<16x16xi32>
    %37 = arith.ori %33, %36 : vector<16x16xi1>
    %38 = vector.extract_strided_slice %25 {offsets = [0, 3], sizes = [16, 1], strides = [1, 1]} : vector<16x4xi32> to vector<16x1xi32>
    %39 = vector.broadcast %38 : vector<16x1xi32> to vector<16x16xi32>
    %40 = arith.cmpi eq, %26, %39 : vector<16x16xi32>
    %41 = arith.ori %37, %40 : vector<16x16xi1>
    %cst_21 = arith.constant -1.000000e+30 : f32
    %42 = vector.broadcast %cst_21 : f32 to vector<16x16xf32>
    %43 = arith.select %41, %24, %42 : vector<16x16xi1>, vector<16x16xf32>
    %cst_22 = arith.constant dense<0xFF800000> : vector<16xf32>
    %44 = vector.multi_reduction <maximumf>, %43, %cst_22 [1] : vector<16x16xf32> to vector<16xf32>
    %45 = vector.shape_cast %44 : vector<16xf32> to vector<16x1xf32>
    %46 = vector.broadcast %45 : vector<16x1xf32> to vector<16x16xf32>
    %47 = arith.subf %43, %46 : vector<16x16xf32>
    %48 = math.exp %47 : vector<16x16xf32>
    %cst_23 = arith.constant dense<0.000000e+00> : vector<16xf32>
    %49 = vector.multi_reduction <add>, %48, %cst_23 [1] : vector<16x16xf32> to vector<16xf32>
    %50 = vector.shape_cast %49 : vector<16xf32> to vector<16x1xf32>
    %51 = vector.broadcast %50 : vector<16x1xf32> to vector<16x16xf32>
    %52 = arith.divf %48, %51 : vector<16x16xf32>
    %cst_24 = arith.constant dense<0.000000e+00> : vector<16x64xf32>
    %53 = tpu.matmul %52, %3, %cst_24 {dimension_numbers = #tpu.dot_dimension_numbers<[1], [0], [0], [1], [0, 0, 1, 1], [], []>} : vector<16x16xf32>, vector<16x64xf32>, vector<16x64xf32> -> vector<16x64xf32>
    %54 = vector.broadcast %9 : vector<1x64xf32> to vector<16x64xf32>
    %55 = arith.addf %53, %54 : vector<16x64xf32>
    %c0_25 = arith.constant 0 : index
    %c0_26 = arith.constant 0 : index
    %56 = vector.load %arg6[%c0_25, %c0_26] : memref<4x64xf32, #tpu.memory_space<vmem>>, vector<1x64xf32>
    %c1_27 = arith.constant 1 : index
    %c0_28 = arith.constant 0 : index
    %57 = vector.load %arg6[%c1_27, %c0_28] : memref<4x64xf32, #tpu.memory_space<vmem>>, vector<1x64xf32>
    %c2_29 = arith.constant 2 : index
    %c0_30 = arith.constant 0 : index
    %58 = vector.load %arg6[%c2_29, %c0_30] : memref<4x64xf32, #tpu.memory_space<vmem>>, vector<1x64xf32>
    %c3_31 = arith.constant 3 : index
    %c0_32 = arith.constant 0 : index
    %59 = vector.load %arg6[%c3_31, %c0_32] : memref<4x64xf32, #tpu.memory_space<vmem>>, vector<1x64xf32>
    %60 = vector.broadcast %56 : vector<1x64xf32> to vector<16x64xf32>
    %61 = arith.mulf %55, %60 : vector<16x64xf32>
    %62 = vector.broadcast %57 : vector<1x64xf32> to vector<16x64xf32>
    %63 = arith.addf %61, %62 : vector<16x64xf32>
    %cst_33 = arith.constant 0.000000e+00 : f32
    %64 = vector.broadcast %cst_33 : f32 to vector<16x64xf32>
    %65 = arith.maximumf %63, %64 : vector<16x64xf32>
    %66 = arith.mulf %65, %4 : vector<16x64xf32>
    %67 = vector.broadcast %58 : vector<1x64xf32> to vector<16x64xf32>
    %68 = arith.mulf %66, %67 : vector<16x64xf32>
    %69 = vector.broadcast %59 : vector<1x64xf32> to vector<16x64xf32>
    %70 = arith.addf %68, %69 : vector<16x64xf32>
    %cst_34 = arith.constant 0.000000e+00 : f32
    %71 = vector.broadcast %cst_34 : f32 to vector<16x64xf32>
    %72 = arith.maximumf %70, %71 : vector<16x64xf32>
    %cst_35 = arith.constant dense<0.000000e+00> : vector<1x16xf32>
    %73 = tpu.matmul %10, %72, %cst_35 {dimension_numbers = #tpu.dot_dimension_numbers<[1], [1], [0], [0], [0, 0, 1, 0], [], []>} : vector<1x64xf32>, vector<16x64xf32>, vector<1x16xf32> -> vector<1x16xf32>
    %c0_36 = arith.constant 0 : index
    %c0_37 = arith.constant 0 : index
    %74 = memref.load %arg7[%c0_36, %c0_37] : memref<1x1xf32, #tpu.memory_space<smem>>
    %75 = vector.broadcast %74 : f32 to vector<1x16xf32>
    %76 = arith.addf %73, %75 : vector<1x16xf32>
    %77 = vector.shape_cast %76 : vector<1x16xf32> to vector<1x1x16xf32>
    %c0_38 = arith.constant 0 : index
    %c0_39 = arith.constant 0 : index
    %c0_40 = arith.constant 0 : index
    %78 = vector.load %arg8[%c0_38, %c0_39, %c0_40] : memref<1x1x16xf32, #tpu.memory_space<vmem>>, vector<1x1x16xf32>
    tpu.vector_store %arg8[%c0_38, %c0_39, %c0_40], %77 {strides = array<i32>} : memref<1x1x16xf32, #tpu.memory_space<vmem>>, vector<1x1x16xf32>,
    return
  }
  func.func @transform_0(%arg0: i32) -> (i32, i32, i32) {
    %c0_i32 = arith.constant 0 : i32
    %c0_i32_0 = arith.constant 0 : i32
    %c0_i32_1 = arith.constant 0 : i32
    return %arg0, %c0_i32, %c0_i32_0 : i32, i32, i32
  }
  func.func @transform_1(%arg0: i32) -> (i32, i32) {
    %c0_i32 = arith.constant 0 : i32
    %c0_i32_0 = arith.constant 0 : i32
    %c0_i32_1 = arith.constant 0 : i32
    return %c0_i32, %c0_i32_0 : i32, i32
  }
  func.func @transform_2(%arg0: i32) -> (i32, i32) {
    %c0_i32 = arith.constant 0 : i32
    %c0_i32_0 = arith.constant 0 : i32
    %c0_i32_1 = arith.constant 0 : i32
    return %c0_i32, %c0_i32_0 : i32, i32
  }
  func.func @transform_3(%arg0: i32) -> (i32, i32) {
    %c0_i32 = arith.constant 0 : i32
    %c0_i32_0 = arith.constant 0 : i32
    %c0_i32_1 = arith.constant 0 : i32
    return %c0_i32, %c0_i32_0 : i32, i32
  }
  func.func @transform_4(%arg0: i32) -> (i32, i32) {
    %c0_i32 = arith.constant 0 : i32
    %c0_i32_0 = arith.constant 0 : i32
    %c0_i32_1 = arith.constant 0 : i32
    return %c0_i32, %c0_i32_0 : i32, i32
  }
  func.func @transform_5(%arg0: i32) -> (i32, i32) {
    %c0_i32 = arith.constant 0 : i32
    %c0_i32_0 = arith.constant 0 : i32
    %c0_i32_1 = arith.constant 0 : i32
    return %c0_i32, %c0_i32_0 : i32, i32
  }
  func.func @transform_6(%arg0: i32) -> (i32, i32) {
    %c0_i32 = arith.constant 0 : i32
    %c0_i32_0 = arith.constant 0 : i32
    %c0_i32_1 = arith.constant 0 : i32
    return %c0_i32, %c0_i32_0 : i32, i32
  }
  func.func @transform_7(%arg0: i32) -> (i32, i32, i32) {
    %c0_i32 = arith.constant 0 : i32
    %c0_i32_0 = arith.constant 0 : i32
    %c0_i32_1 = arith.constant 0 : i32
    return %arg0, %c0_i32, %c0_i32_0 : i32, i32, i32
  }
}

</mosaic_0001>

<llo_original>
// kernel: tpu_custom_call.1
$region0: #{tpu_custom_call.1}
  #allocation0 [shape = 'u32[]', space=smem, size = 0x4, offset = 0x4, fixed_abs, tag = 'smem constant byte address 0x4 - core index']
  #allocation1 [shape = 'u32[144,128]{1,0:T(1,128)}', space=vmem, size = 0x12000, scoped, tag = 'internal scratch']
  #allocation2 [shape = 'f32[1,1]{1,0:T(1,128)S(6)}', space=smem, size = 0x200, scoped, tag = 'scoped memory for tpu_custom_call.1']
  %s0 = inlined_call_operand.vmem [shape: f32[2,16,10], index: 0, kind: input, shape index: {}]
  %s1 = inlined_call_operand.vmem [shape: f32[10,64], index: 1, kind: input, shape index: {}]
  %s2 = inlined_call_operand.vmem [shape: f32[16,64], index: 2, kind: input, shape index: {}]
  %s3 = inlined_call_operand.vmem [shape: s32[16,4], index: 3, kind: input, shape index: {}]
  %s4 = inlined_call_operand.vmem [shape: f32[6,64], index: 4, kind: input, shape index: {}]
  %s5 = inlined_call_operand.vmem [shape: f32[4,64], index: 5, kind: input, shape index: {}]
  %s6 = inlined_call_operand.<no memory space> [shape: f32[1,1], index: 6, kind: input, shape index: {}]
  %s7 = inlined_call_operand.hbm [shape: f32[2,1,16], index: 7, kind: output, shape index: {}]
  %s8 = sld [smem:[#allocation0]]
  $region61: #{tpu_custom_call.1} parent=0
    _
  %s10 = ssub.s32 1, %s8
  %s11 = scalar_select 0, %s10, %s8
  %12 = sst [smem:[#allocation2]] %s6
  $region1: #{tpu_custom_call.1} parent=0
    #allocation3 [shape = 'u8[1024]{0}', space=vmem, size = 0x400, scoped, tag = 'output window, operand 0']
    #allocation4 [shape = 's32[2]{0}', space=sflag, size = 0x8, scoped, tag = 'scoped memory for tpu_custom_call.1']
    %13 = vsyncpa [#allocation4], 0
    %s14 = scalar_lea.sflag [#allocation4], 1
    %15 = vsyncpa %s14, 0
    loop: start=0, step=1, limit=4
    $region2: #{tpu_custom_call.1} parent=1 // loop_pre_header
      _
    $region3: #{tpu_custom_call.1} parent=1 // loop_header
      %s17 = sphi 0, %s21
      %p18 = scmp.ge.s32.totalorder %s17, 4
      %s27 = sphi 0, %s29
      %s30 = sphi 0, %s27
      %s31 = sphi 0, %s30
      %s47 = sphi 0, %s31
      %s51 = sphi 0, %s51
      %s53 = sphi 0, %s51
      %s54 = sphi 0, %s53
      %s68 = sphi 0, %s54
      %s72 = sphi 0, %s72
      %s74 = sphi 0, %s72
      %s75 = sphi 0, %s74
      %s89 = sphi 0, %s75
      %s93 = sphi 0, %s93
      %s95 = sphi 0, %s93
      %s96 = sphi 0, %s95
      %s110 = sphi 0, %s96
      %s114 = sphi 0, %s114
      %s116 = sphi 0, %s114
      %s117 = sphi 0, %s116
      %s131 = sphi 0, %s117
      %s135 = sphi 0, %s135
      %s137 = sphi 0, %s135
      %s138 = sphi 0, %s137
      %s152 = sphi 0, %s138
      %s156 = sphi 0, %s156
      %s158 = sphi 0, %s156
      %s159 = sphi 0, %s158
      %s173 = sphi 0, %s159
      %s179 = sphi 0, %s181
      %s182 = sphi 0, %s179
      %s183 = sphi 0, %s182
      %s199 = sphi 0, %s183
    $region4: #{tpu_custom_call.1} parent=1 // loop_header_branch
      %20 = sbr.rel (%p18) target = $region8
    $region5: #{tpu_custom_call.1} parent=1 // loop_body
      %s22 = ssub.s32 %s17, 1
      %s23 = ssub.s32 %s17, 2
      %s24 = sadd.s32 %s17, 1
      %s25 = ssub.s32 %s17, %s24
      %p26 = scmp.eq.s32.totalorder %s25, 0
      %s28 = sadd.s32 %s27, 1
      %s29 = scalar_select %p26, %s27, %s28
      %p32 = pneg %p26
      %p33 = scmp.eq.s32.totalorder %s17, 1
      %p34 = por %p32, %p33
      %p35 = scmp.ne.s32.totalorder %s27, %s30
      %p36 = scmp.eq.s32.totalorder %s17, 0
      %p37 = por %p35, %p36
      %p38 = scmp.ne.s32.totalorder %s27, %s30
      %p39 = scmp.eq.s32.totalorder %s22, 1
      %p40 = por %p38, %p39
      %p41 = scmp.ne.s32.totalorder %s30, %s31
      %p42 = scmp.eq.s32.totalorder %s22, 0
      %p43 = por %p41, %p42
      %p44 = scmp.ne.s32.totalorder %s30, %s31
      %p45 = scmp.eq.s32.totalorder %s23, 1
      %p46 = por %p44, %p45
      %p48 = scmp.ne.s32.totalorder %s31, %s47
      %p49 = scmp.eq.s32.totalorder %s23, 0
      %p50 = por %p48, %p49
      %s52 = sadd.s32 %s51, 1
      %p55 = scmp.eq.s32.totalorder %s17, 1
      %p56 = scmp.ne.s32.totalorder %s51, %s53
      %p57 = scmp.eq.s32.totalorder %s17, 0
      %p58 = por %p56, %p57
      %p59 = scmp.ne.s32.totalorder %s51, %s53
      %p60 = scmp.eq.s32.totalorder %s22, 1
      %p61 = por %p59, %p60
      %p62 = scmp.ne.s32.totalorder %s53, %s54
      %p63 = scmp.eq.s32.totalorder %s22, 0
      %p64 = por %p62, %p63
      %p65 = scmp.ne.s32.totalorder %s53, %s54
      %p66 = scmp.eq.s32.totalorder %s23, 1
      %p67 = por %p65, %p66
      %p69 = scmp.ne.s32.totalorder %s54, %s68
      %p70 = scmp.eq.s32.totalorder %s23, 0
      %p71 = por %p69, %p70
      %s73 = sadd.s32 %s72, 1
      %p76 = scmp.eq.s32.totalorder %s17, 1
      %p77 = scmp.ne.s32.totalorder %s72, %s74
      %p78 = scmp.eq.s32.totalorder %s17, 0
      %p79 = por %p77, %p78
      %p80 = scmp.ne.s32.totalorder %s72, %s74
      %p81 = scmp.eq.s32.totalorder %s22, 1
      %p82 = por %p80, %p81
      %p83 = scmp.ne.s32.totalorder %s74, %s75
      %p84 = scmp.eq.s32.totalorder %s22, 0
      %p85 = por %p83, %p84
      %p86 = scmp.ne.s32.totalorder %s74, %s75
      %p87 = scmp.eq.s32.totalorder %s23, 1
      %p88 = por %p86, %p87
      %p90 = scmp.ne.s32.totalorder %s75, %s89
      %p91 = scmp.eq.s32.totalorder %s23, 0
      %p92 = por %p90, %p91
      %s94 = sadd.s32 %s93, 1
      %p97 = scmp.eq.s32.totalorder %s17, 1
      %p98 = scmp.ne.s32.totalorder %s93, %s95
      %p99 = scmp.eq.s32.totalorder %s17, 0
      %p100 = por %p98, %p99
      %p101 = scmp.ne.s32.totalorder %s93, %s95
      %p102 = scmp.eq.s32.totalorder %s22, 1
      %p103 = por %p101, %p102
      %p104 = scmp.ne.s32.totalorder %s95, %s96
      %p105 = scmp.eq.s32.totalorder %s22, 0
      %p106 = por %p104, %p105
      %p107 = scmp.ne.s32.totalorder %s95, %s96
      %p108 = scmp.eq.s32.totalorder %s23, 1
      %p109 = por %p107, %p108
      %p111 = scmp.ne.s32.totalorder %s96, %s110
      %p112 = scmp.eq.s32.totalorder %s23, 0
      %p113 = por %p111, %p112
      %s115 = sadd.s32 %s114, 1
      %p118 = scmp.eq.s32.totalorder %s17, 1
      %p119 = scmp.ne.s32.totalorder %s114, %s116
      %p120 = scmp.eq.s32.totalorder %s17, 0
      %p121 = por %p119, %p120
      %p122 = scmp.ne.s32.totalorder %s114, %s116
      %p123 = scmp.eq.s32.totalorder %s22, 1
      %p124 = por %p122, %p123
      %p125 = scmp.ne.s32.totalorder %s116, %s117
      %p126 = scmp.eq.s32.totalorder %s22, 0
      %p127 = por %p125, %p126
      %p128 = scmp.ne.s32.totalorder %s116, %s117
      %p129 = scmp.eq.s32.totalorder %s23, 1
      %p130 = por %p128, %p129
      %p132 = scmp.ne.s32.totalorder %s117, %s131
      %p133 = scmp.eq.s32.totalorder %s23, 0
      %p134 = por %p132, %p133
      %s136 = sadd.s32 %s135, 1
      %p139 = scmp.eq.s32.totalorder %s17, 1
      %p140 = scmp.ne.s32.totalorder %s135, %s137
      %p141 = scmp.eq.s32.totalorder %s17, 0
      %p142 = por %p140, %p141
      %p143 = scmp.ne.s32.totalorder %s135, %s137
      %p144 = scmp.eq.s32.totalorder %s22, 1
      %p145 = por %p143, %p144
      %p146 = scmp.ne.s32.totalorder %s137, %s138
      %p147 = scmp.eq.s32.totalorder %s22, 0
      %p148 = por %p146, %p147
      %p149 = scmp.ne.s32.totalorder %s137, %s138
      %p150 = scmp.eq.s32.totalorder %s23, 1
      %p151 = por %p149, %p150
      %p153 = scmp.ne.s32.totalorder %s138, %s152
      %p154 = scmp.eq.s32.totalorder %s23, 0
      %p155 = por %p153, %p154
      %s157 = sadd.s32 %s156, 1
      %p160 = scmp.eq.s32.totalorder %s17, 1
      %p161 = scmp.ne.s32.totalorder %s156, %s158
      %p162 = scmp.eq.s32.totalorder %s17, 0
      %p163 = por %p161, %p162
      %p164 = scmp.ne.s32.totalorder %s156, %s158
      %p165 = scmp.eq.s32.totalorder %s22, 1
      %p166 = por %p164, %p165
      %p167 = scmp.ne.s32.totalorder %s158, %s159
      %p168 = scmp.eq.s32.totalorder %s22, 0
      %p169 = por %p167, %p168
      %p170 = scmp.ne.s32.totalorder %s158, %s159
      %p171 = scmp.eq.s32.totalorder %s23, 1
      %p172 = por %p170, %p171
      %p174 = scmp.ne.s32.totalorder %s159, %s173
      %p175 = scmp.eq.s32.totalorder %s23, 0
      %p176 = por %p174, %p175
      %s177 = ssub.s32 %s17, %s24
      %p178 = scmp.eq.s32.totalorder %s177, 0
      %s180 = sadd.s32 %s179, 1
      %s181 = scalar_select %p178, %s179, %s180
      %p184 = pneg %p178
      %p185 = scmp.eq.s32.totalorder %s17, 1
      %p186 = por %p184, %p185
      %p187 = scmp.ne.s32.totalorder %s179, %s182
      %p188 = scmp.eq.s32.totalorder %s17, 0
      %p189 = por %p187, %p188
      %p190 = scmp.ne.s32.totalorder %s179, %s182
      %p191 = scmp.eq.s32.totalorder %s22, 1
      %p192 = por %p190, %p191
      %p193 = scmp.ne.s32.totalorder %s182, %s183
      %p194 = scmp.eq.s32.totalorder %s22, 0
      %p195 = por %p193, %p194
      %p196 = scmp.ne.s32.totalorder %s182, %s183
      %p197 = scmp.eq.s32.totalorder %s23, 1
      %p198 = por %p196, %p197
      %p200 = scmp.ne.s32.totalorder %s183, %s199
      %p201 = scmp.eq.s32.totalorder %s23, 0
      %p202 = por %p200, %p201
      %p203 = scmp.le.s32.totalorder 1, %s17
      %p204 = scmp.lt.s32.totalorder %s17, 3
      %p205 = pnand %p203, %p204
      %p206 = pneg %p205
      // Predicated region
      $region9: #{tpu_custom_call.1} parent=5 // pred_check
        _
      $region10: #{tpu_custom_call.1} parent=5 // pred_check_branch
        %208 = sbr.rel (%p205) target = $region12
      $region11: #{tpu_custom_call.1} parent=5 // pred_region
        %s209 = ssub.s32 %s17, 1
        // Predicated region
        $region13: #{tpu_custom_call.1} parent=11 // pred_check
          %p210 = pneg %p64
        $region14: #{tpu_custom_call.1} parent=11 // pred_check_branch
          %212 = sbr.rel (%p210) target = $region16
        $region15: #{tpu_custom_call.1} parent=11 // pred_region
          _
        $region16: #{tpu_custom_call.1} parent=11 // pred_fallthru
          _
        // Predicated region
        $region17: #{tpu_custom_call.1} parent=11 // pred_check
          %p213 = pneg %p85
        $region18: #{tpu_custom_call.1} parent=11 // pred_check_branch
          %215 = sbr.rel (%p213) target = $region20
        $region19: #{tpu_custom_call.1} parent=11 // pred_region
          _
        $region20: #{tpu_custom_call.1} parent=11 // pred_fallthru
          _
        // Predicated region
        $region21: #{tpu_custom_call.1} parent=11 // pred_check
          %p216 = pneg %p106
        $region22: #{tpu_custom_call.1} parent=11 // pred_check_branch
          %218 = sbr.rel (%p216) target = $region24
        $region23: #{tpu_custom_call.1} parent=11 // pred_region
          _
        $region24: #{tpu_custom_call.1} parent=11 // pred_fallthru
          _
        // Predicated region
        $region25: #{tpu_custom_call.1} parent=11 // pred_check
          %p219 = pneg %p127
        $region26: #{tpu_custom_call.1} parent=11 // pred_check_branch
          %221 = sbr.rel (%p219) target = $region28
        $region27: #{tpu_custom_call.1} parent=11 // pred_region
          _
        $region28: #{tpu_custom_call.1} parent=11 // pred_fallthru
          _
        // Predicated region
        $region29: #{tpu_custom_call.1} parent=11 // pred_check
          %p222 = pneg %p148
        $region30: #{tpu_custom_call.1} parent=11 // pred_check_branch
          %224 = sbr.rel (%p222) target = $region32
        $region31: #{tpu_custom_call.1} parent=11 // pred_region
          _
        $region32: #{tpu_custom_call.1} parent=11 // pred_fallthru
          _
        // Predicated region
        $region33: #{tpu_custom_call.1} parent=11 // pred_check
          %p225 = pneg %p169
        $region34: #{tpu_custom_call.1} parent=11 // pred_check_branch
          %227 = sbr.rel (%p225) target = $region36
        $region35: #{tpu_custom_call.1} parent=11 // pred_region
          _
        $region36: #{tpu_custom_call.1} parent=11 // pred_fallthru
          _
      $region12: #{tpu_custom_call.1} parent=5 // pred_fallthru
        _
      %p228 = scmp.lt.s32.totalorder %s17, 2
      // Predicated region
      $region37: #{tpu_custom_call.1} parent=5 // pred_check
        %p229 = pneg %p228
      $region38: #{tpu_custom_call.1} parent=5 // pred_check_branch
        %231 = sbr.rel (%p229) target = $region40
      $region39: #{tpu_custom_call.1} parent=5 // pred_region
        // Predicated region
        $region41: #{tpu_custom_call.1} parent=39 // pred_check
          %p232 = pneg %p37
        $region42: #{tpu_custom_call.1} parent=39 // pred_check_branch
          %234 = sbr.rel (%p232) target = $region44
        $region43: #{tpu_custom_call.1} parent=39 // pred_region
          %p235 = scmp.lt.s32.totalorder %s17, 1
          %s236 = scalar_select %p235, %s17, 1
          %s237 = smul.addr %s236, 2
          %s238 = smul.addr %s237, 8
          %s239 = scalar_lea.vmem %s0, %s238
        $region44: #{tpu_custom_call.1} parent=39 // pred_fallthru
          _
      $region40: #{tpu_custom_call.1} parent=5 // pred_fallthru
        _
      %p240 = scmp.le.s32.totalorder 1, %s17
      %p241 = scmp.lt.s32.totalorder %s17, 3
      %p242 = pnand %p240, %p241
      %p243 = pneg %p242
      // Predicated region
      $region45: #{tpu_custom_call.1} parent=5 // pred_check
        _
      $region46: #{tpu_custom_call.1} parent=5 // pred_check_branch
        %245 = sbr.rel (%p242) target = $region48
      $region47: #{tpu_custom_call.1} parent=5 // pred_region
        %s246 = ssub.s32 %s17, 1
        %p247 = scmp.lt.s32.totalorder %s22, 1
        %s248 = scalar_select %p247, %s22, 1
        %s249 = smul.addr %s248, 2
        %s250 = smul.addr %s249, 8
        %s251 = scalar_lea.vmem %s0, %s250
        %p252 = pneg %p43
        %p253 = pneg %p40
        %p254 = pneg %p64
        %p255 = pneg %p61
        %p256 = pneg %p85
        %p257 = pneg %p82
        %p258 = pneg %p106
        %p259 = pneg %p103
        %p260 = pneg %p127
        %p261 = pneg %p124
        %p262 = pneg %p148
        %p263 = pneg %p145
        %p264 = pneg %p169
        %p265 = pneg %p166
        %p266 = pneg %p195
        %p267 = pneg %p192
        %s268 = sand.u32 %s182, 1
        %s269 = scalar_lea.sflag [#allocation4], %s268
        %s270 = sand.u32 %s182, 1
        %s271 = scalar_lea.vmem [#allocation3], %s270
        %p272 = scmp.lt.s32.totalorder %s22, 1
        %s273 = scalar_select %p272, %s22, 1
        %s274 = smul.addr %s273, 2
        %s275 = smul.addr %s274, 8
        %s276 = scalar_lea.vmem %s0, %s275
        %v277 = vld [vmem:[%s276] sm:$0xff]
        %v278 = vld [vmem:[%s276 + $0x8] sm:$0xff]
        %v279 = vld [vmem:[%s1] sm:$0xff]
        %v280 = vld [vmem:[%s1 + $0x8] sm:$0x3]
        %vm281 = vcmask 80896
        %v283 = vsel %vm281, %v277, 0
        %v286 = vsel %vm281, %v278, 0
        %vm288 = vcmask 1041408
        %v290 = vsel %vm288, %v280, 0
        %292 = vmatprep.subr.mxu0 0.0
        %293 = vmatpush1.msra.mxu0 0.0
        %294 = vmatprep.subr.mxu0 0.0
        %295 = vmatpush1.msra.mxu0 0.0
        %296 = vmatprep.subr.mxu0 0.0
        %297 = vmatpush1.msra.mxu0 0.0
        %298 = vmatprep.subr.mxu0 0.0
        %299 = vmatpush1.msra.mxu0 0.0
        %300 = vmatprep.subr.mxu0 0.0
        %301 = vmatpush1.msra.mxu0 0.0
        %302 = vmatprep.subr.mxu0 0.0
        %303 = vmatpush1.msra.mxu0 0.0
        %304 = vmatprep.subr.mxu0 0.0
        %305 = vmatpush1.msra.mxu0 0.0
        %306 = vmatprep.subr.mxu0 0.0
        %307 = vmatpush1.msra.mxu0 0.0
        %308 = vmatprep.subr.mxu0 0.0
        %309 = vmatpush1.msra.mxu0 0.0
        %310 = vmatprep.subr.mxu0 0.0
        %311 = vmatpush1.msra.mxu0 0.0
        %312 = vmatprep.subr.mxu0 0.0
        %313 = vmatpush1.msra.mxu0 0.0
        %314 = vmatprep.subr.mxu0 0.0
        %315 = vmatpush1.msra.mxu0 0.0
        %316 = vmatprep.subr.mxu0 0.0
        %317 = vmatpush1.msra.mxu0 0.0
        %318 = vmatprep.subr.mxu0 0.0
        %319 = vmatpush1.msra.mxu0 0.0
        %320 = vmatprep.subr.mxu0 0.0
        %321 = vmatpush1.msra.mxu0 %v290
        %322 = vmatprep.subr.mxu0 0.0
        %323 = vmatpush1.msra.mxu0 %v279
        %324 = vmatprep.subr.mxu0 0.0
        %325 = vmatpush2.msra.mxu0 0.0
        %326 = vmatprep.subr.mxu0 0.0
        %327 = vmatpush2.msra.mxu0 0.0
        %328 = vmatprep.subr.mxu0 0.0
        %329 = vmatpush2.msra.mxu0 0.0
        %330 = vmatprep.subr.mxu0 0.0
        %331 = vmatpush2.msra.mxu0 0.0
        %332 = vmatprep.subr.mxu0 0.0
        %333 = vmatpush2.msra.mxu0 0.0
        %334 = vmatprep.subr.mxu0 0.0
        %335 = vmatpush2.msra.mxu0 0.0
        %336 = vmatprep.subr.mxu0 0.0
        %337 = vmatpush2.msra.mxu0 0.0
        %338 = vmatprep.subr.mxu0 0.0
        %339 = vmatpush2.msra.mxu0 0.0
        %340 = vmatprep.subr.mxu0 0.0
        %341 = vmatpush2.msra.mxu0 0.0
        %342 = vmatprep.subr.mxu0 0.0
        %343 = vmatpush2.msra.mxu0 0.0
        %344 = vmatprep.subr.mxu0 0.0
        %345 = vmatpush2.msra.mxu0 0.0
        %346 = vmatprep.subr.mxu0 0.0
        %347 = vmatpush2.msra.mxu0 0.0
        %348 = vmatprep.subr.mxu0 0.0
        %349 = vmatpush2.msra.mxu0 0.0
        %350 = vmatprep.subr.mxu0 0.0
        %351 = vmatpush2.msra.mxu0 0.0
        %352 = vmatprep.subr.mxu0 0.0
        %353 = vmatpush2.msra.mxu0 0.0
        %354 = vmatprep.subr.mxu0 0.0
        %355 = vmatpush2.msra.mxu0 0.0
        %356 = vmatprep.mubr.f32.mxu0 0.0
        %357 = vmatmul.mubr.f32.gmra.mxu0 %v283
        %v358 = vpop.f32.mrf.mxu0
        %v359 = vadd.f32 0.0, %v358
        %v360 = vpop.f32.mrf.mxu0
        %361 = vmatprep.mubr.f32.mxu0 0.0
        %362 = vmatmul.mubr.f32.gmra.mxu0 %v286
        %v363 = vpop.f32.mrf.mxu0
        %v364 = vadd.f32 0.0, %v363
        %v365 = vpop.f32.mrf.mxu0
        %366 = vdwg.mxu0
        %v367 = vld [vmem:[%s2] sm:$0xff]
        %v368 = vld [vmem:[%s2 + $0x8] sm:$0xff]
        %v369 = vld [vmem:[%s4] sm:$0x1]
        %v370 = vld [vmem:[%s4 + $0x1] sm:$0x1]
        %v371 = vld [vmem:[%s4 + $0x2] sm:$0x1]
        %v372 = vld [vmem:[%s4 + $0x3] sm:$0x1]
        %v373 = vld [vmem:[%s4 + $0x4] sm:$0x1]
        %v374 = vld [vmem:[%s4 + $0x5] sm:$0x1]
        %v375 = vlaneseq
        %v376 = vshrl.u32 %v375, 7
        %v377 = vsub.s32 0, %v376
        %v378 = vrot.slane %v370, %v377
        %v379 = vmul.f32 %v367, %v378
        %v380 = vmul.f32 %v368, %v378
        %vm381 = vcmask 523264
        %v382 = vsel %vm381, %v379, 0.0
        %383 = vadd.xlane.f32.xlu0 %v382
        %v384 = vpop.xlane.xlu0 %383
        %v385 = vsel %vm381, %v380, 0.0
        %386 = vadd.xlane.f32.xlu0 %v385
        %v387 = vpop.xlane.xlu0 %386
        %v388 = vlaneseq
        %v389 = vshrl.u32 %v388, 7
        %v390 = vsub.s32 0, %v389
        %v391 = vrot.slane %v369, %v390
        %v392 = vmul.f32 %v359, %v391
        %v393 = vmul.f32 %v364, %v391
        %v394 = vsel %vm381, %v392, 0.0
        %395 = vadd.xlane.f32.xlu0 %v394
        %v396 = vpop.xlane.xlu0 %395
        %v397 = vadd.f32 %v396, %v384
        %v398 = vsel %vm381, %v393, 0.0
        %399 = vadd.xlane.f32.xlu0 %v398
        %v400 = vpop.xlane.xlu0 %399
        %v401 = vadd.f32 %v400, %v387
        %v403 = vsel %vm381, %v372, 0
        %v406 = vsel %vm381, %v367, 0
        %v409 = vsel %vm381, %v368, 0
        %411 = vmatprep.subr.mxu0 0.0
        %412 = vmatpush1.xpose.msra.mxu0 0.0
        %413 = vmatprep.subr.mxu0 0.0
        %414 = vmatpush1.xpose.msra.mxu0 0.0
        %415 = vmatprep.subr.mxu0 0.0
        %416 = vmatpush1.xpose.msra.mxu0 0.0
        %417 = vmatprep.subr.mxu0 0.0
        %418 = vmatpush1.xpose.msra.mxu0 0.0
        %419 = vmatprep.subr.mxu0 0.0
        %420 = vmatpush1.xpose.msra.mxu0 0.0
        %421 = vmatprep.subr.mxu0 0.0
        %422 = vmatpush1.xpose.msra.mxu0 0.0
        %423 = vmatprep.subr.mxu0 0.0
        %424 = vmatpush1.xpose.msra.mxu0 0.0
        %425 = vmatprep.subr.mxu0 0.0
        %426 = vmatpush1.xpose.msra.mxu0 0.0
        %427 = vmatprep.subr.mxu0 0.0
        %428 = vmatpush1.xpose.msra.mxu0 0.0
        %429 = vmatprep.subr.mxu0 0.0
        %430 = vmatpush1.xpose.msra.mxu0 0.0
        %431 = vmatprep.subr.mxu0 0.0
        %432 = vmatpush1.xpose.msra.mxu0 0.0
        %433 = vmatprep.subr.mxu0 0.0
        %434 = vmatpush1.xpose.msra.mxu0 0.0
        %435 = vmatprep.subr.mxu0 0.0
        %436 = vmatpush1.xpose.msra.mxu0 0.0
        %437 = vmatprep.subr.mxu0 0.0
        %438 = vmatpush1.xpose.msra.mxu0 0.0
        %439 = vmatprep.subr.mxu0 0.0
        %440 = vmatpush1.xpose.msra.mxu0 %v409
        %441 = vmatprep.subr.mxu0 0.0
        %442 = vmatpush1.xpose.msra.mxu0 %v406
        %443 = vmatprep.subr.mxu0 0.0
        %444 = vmatpush2.xpose.msra.mxu0 0.0
        %445 = vmatprep.subr.mxu0 0.0
        %446 = vmatpush2.xpose.msra.mxu0 0.0
        %447 = vmatprep.subr.mxu0 0.0
        %448 = vmatpush2.xpose.msra.mxu0 0.0
        %449 = vmatprep.subr.mxu0 0.0
        %450 = vmatpush2.xpose.msra.mxu0 0.0
        %451 = vmatprep.subr.mxu0 0.0
        %452 = vmatpush2.xpose.msra.mxu0 0.0
        %453 = vmatprep.subr.mxu0 0.0
        %454 = vmatpush2.xpose.msra.mxu0 0.0
        %455 = vmatprep.subr.mxu0 0.0
        %456 = vmatpush2.xpose.msra.mxu0 0.0
        %457 = vmatprep.subr.mxu0 0.0
        %458 = vmatpush2.xpose.msra.mxu0 0.0
        %459 = vmatprep.subr.mxu0 0.0
        %460 = vmatpush2.xpose.msra.mxu0 0.0
        %461 = vmatprep.subr.mxu0 0.0
        %462 = vmatpush2.xpose.msra.mxu0 0.0
        %463 = vmatprep.subr.mxu0 0.0
        %464 = vmatpush2.xpose.msra.mxu0 0.0
        %465 = vmatprep.subr.mxu0 0.0
        %466 = vmatpush2.xpose.msra.mxu0 0.0
        %467 = vmatprep.subr.mxu0 0.0
        %468 = vmatpush2.xpose.msra.mxu0 0.0
        %469 = vmatprep.subr.mxu0 0.0
        %470 = vmatpush2.xpose.msra.mxu0 0.0
        %471 = vmatprep.subr.mxu0 0.0
        %472 = vmatpush2.xpose.msra.mxu0 0.0
        %473 = vmatprep.subr.mxu0 0.0
        %474 = vmatpush2.xpose.msra.mxu0 0.0
        %475 = vmatprep.mubr.f32.mxu0 0.0
        %476 = vmatmul.mubr.f32.gmra.mxu0 %v403
        %v477 = vpop.f32.mrf.mxu0
        %v478 = vadd.f32 0.0, %v477
        %v479 = vpop.f32.mrf.mxu0
        %480 = vdwg.mxu0
        %v482 = vsel %vm381, %v371, 0
        %v485 = vsel %vm381, %v359, 0
        %v488 = vsel %vm381, %v364, 0
        %490 = vmatprep.subr.mxu0 0.0
        %491 = vmatpush1.xpose.msra.mxu0 0.0
        %492 = vmatprep.subr.mxu0 0.0
        %493 = vmatpush1.xpose.msra.mxu0 0.0
        %494 = vmatprep.subr.mxu0 0.0
        %495 = vmatpush1.xpose.msra.mxu0 0.0
        %496 = vmatprep.subr.mxu0 0.0
        %497 = vmatpush1.xpose.msra.mxu0 0.0
        %498 = vmatprep.subr.mxu0 0.0
        %499 = vmatpush1.xpose.msra.mxu0 0.0
        %500 = vmatprep.subr.mxu0 0.0
        %501 = vmatpush1.xpose.msra.mxu0 0.0
        %502 = vmatprep.subr.mxu0 0.0
        %503 = vmatpush1.xpose.msra.mxu0 0.0
        %504 = vmatprep.subr.mxu0 0.0
        %505 = vmatpush1.xpose.msra.mxu0 0.0
        %506 = vmatprep.subr.mxu0 0.0
        %507 = vmatpush1.xpose.msra.mxu0 0.0
        %508 = vmatprep.subr.mxu0 0.0
        %509 = vmatpush1.xpose.msra.mxu0 0.0
        %510 = vmatprep.subr.mxu0 0.0
        %511 = vmatpush1.xpose.msra.mxu0 0.0
        %512 = vmatprep.subr.mxu0 0.0
        %513 = vmatpush1.xpose.msra.mxu0 0.0
        %514 = vmatprep.subr.mxu0 0.0
        %515 = vmatpush1.xpose.msra.mxu0 0.0
        %516 = vmatprep.subr.mxu0 0.0
        %517 = vmatpush1.xpose.msra.mxu0 0.0
        %518 = vmatprep.subr.mxu0 0.0
        %519 = vmatpush1.xpose.msra.mxu0 %v488
        %520 = vmatprep.subr.mxu0 0.0
        %521 = vmatpush1.xpose.msra.mxu0 %v485
        %522 = vmatprep.subr.mxu0 0.0
        %523 = vmatpush2.xpose.msra.mxu0 0.0
        %524 = vmatprep.subr.mxu0 0.0
        %525 = vmatpush2.xpose.msra.mxu0 0.0
        %526 = vmatprep.subr.mxu0 0.0
        %527 = vmatpush2.xpose.msra.mxu0 0.0
        %528 = vmatprep.subr.mxu0 0.0
        %529 = vmatpush2.xpose.msra.mxu0 0.0
        %530 = vmatprep.subr.mxu0 0.0
        %531 = vmatpush2.xpose.msra.mxu0 0.0
        %532 = vmatprep.subr.mxu0 0.0
        %533 = vmatpush2.xpose.msra.mxu0 0.0
        %534 = vmatprep.subr.mxu0 0.0
        %535 = vmatpush2.xpose.msra.mxu0 0.0
        %536 = vmatprep.subr.mxu0 0.0
        %537 = vmatpush2.xpose.msra.mxu0 0.0
        %538 = vmatprep.subr.mxu0 0.0
        %539 = vmatpush2.xpose.msra.mxu0 0.0
        %540 = vmatprep.subr.mxu0 0.0
        %541 = vmatpush2.xpose.msra.mxu0 0.0
        %542 = vmatprep.subr.mxu0 0.0
        %543 = vmatpush2.xpose.msra.mxu0 0.0
        %544 = vmatprep.subr.mxu0 0.0
        %545 = vmatpush2.xpose.msra.mxu0 0.0
        %546 = vmatprep.subr.mxu0 0.0
        %547 = vmatpush2.xpose.msra.mxu0 0.0
        %548 = vmatprep.subr.mxu0 0.0
        %549 = vmatpush2.xpose.msra.mxu0 0.0
        %550 = vmatprep.subr.mxu0 0.0
        %551 = vmatpush2.xpose.msra.mxu0 0.0
        %552 = vmatprep.subr.mxu0 0.0
        %553 = vmatpush2.xpose.msra.mxu0 0.0
        %554 = vmatprep.mubr.f32.mxu0 0.0
        %555 = vmatmul.mubr.f32.gmra.mxu0 %v482
        %v556 = vpop.f32.mrf.mxu0
        %v557 = vadd.f32 %v478, %v556
        %v558 = vpop.f32.mrf.mxu0
        %559 = vdwg.mxu0
        %v560 = vlaneseq
        %v561 = vshrl.u32 %v560, 7
        %v562 = vsub.s32 0, %v561
        %v563 = vrot.slane %v557, %v562
        %v564 = vadd.f32 %v397, %v563
        %v565 = vadd.f32 %v401, %v563
        %vm566 = vcmp.ge.f32.partialorder %v564, 0.0
        %vm567 = vcmp.ge.f32.partialorder %v565, 0.0
        %v568 = vmul.f32 %v564, 0.2
        %v569 = vmul.f32 %v565, 0.2
        %v570 = vsel %vm566, %v564, %v568
        %v571 = vsel %vm567, %v565, %v569
        %v572 = vld [vmem:[%s3] sm:$0xff]
        %v573 = vld [vmem:[%s3 + $0x8] sm:$0xff]
        %v574 = vlaneseq
        %v575 = vand.u32 %v574, 127
        %576 = vset.pattern.permute.xlu0 0
        %577 = vperm.xlu0 %576, %v572
        %v578 = vpop.permute.xlu0 %577
        %579 = vset.pattern.permute.xlu0 0
        %580 = vperm.xlu0 %579, %v573
        %v581 = vpop.permute.xlu0 %580
        %vm582 = vcmp.eq.s32.totalorder %v575, %v578
        %vm583 = vcmp.eq.s32.totalorder %v575, %v581
        %584 = vset.pattern.permute.xlu0 1
        %585 = vperm.xlu0 %584, %v572
        %v586 = vpop.permute.xlu0 %585
        %587 = vset.pattern.permute.xlu0 1
        %588 = vperm.xlu0 %587, %v573
        %v589 = vpop.permute.xlu0 %588
        %vm590 = vcmp.eq.s32.totalorder %v575, %v586
        %vm591 = vcmp.eq.s32.totalorder %v575, %v589
        %vm592 = vmor %vm582, %vm590
        %vm593 = vmor %vm583, %vm591
        %594 = vset.pattern.permute.xlu0 2
        %595 = vperm.xlu0 %594, %v572
        %v596 = vpop.permute.xlu0 %595
        %597 = vset.pattern.permute.xlu0 2
        %598 = vperm.xlu0 %597, %v573
        %v599 = vpop.permute.xlu0 %598
        %vm600 = vcmp.eq.s32.totalorder %v575, %v596
        %vm601 = vcmp.eq.s32.totalorder %v575, %v599
        %vm602 = vmor %vm592, %vm600
        %vm603 = vmor %vm593, %vm601
        %604 = vset.pattern.permute.xlu0 3
        %605 = vperm.xlu0 %604, %v572
        %v606 = vpop.permute.xlu0 %605
        %607 = vset.pattern.permute.xlu0 3
        %608 = vperm.xlu0 %607, %v573
        %v609 = vpop.permute.xlu0 %608
        %vm610 = vcmp.eq.s32.totalorder %v575, %v606
        %vm611 = vcmp.eq.s32.totalorder %v575, %v609
        %vm612 = vmor %vm602, %vm610
        %vm613 = vmor %vm603, %vm611
        %v614 = vsel %vm612, %v570, -1e+30
        %v615 = vsel %vm613, %v571, -1e+30
        %vm616 = vcmask 130048
        %v617 = vsel %vm616, %v614, -inf
        %618 = vmax.xlane.f32.xlu0 %v617
        %v619 = vpop.xlane.xlu0 %618
        %v620 = vsel %vm616, %v615, -inf
        %621 = vmax.xlane.f32.xlu0 %v620
        %v622 = vpop.xlane.xlu0 %621
        %v623 = vsub.f32 %v614, %v619
        %v624 = vsub.f32 %v615, %v622
        %v625 = vmul.f32 %v623, 1.442695
        %v626 = vpow.pop %v625
        %v627 = vmul.f32 %v624, 1.442695
        %v628 = vpow.pop %v627
        %v629 = vsel %vm616, %v626, 0.0
        %630 = vadd.xlane.f32.xlu0 %v629
        %v631 = vpop.xlane.xlu0 %630
        %v632 = vsel %vm616, %v628, 0.0
        %633 = vadd.xlane.f32.xlu0 %v632
        %v634 = vpop.xlane.xlu0 %633
        %v635 = vrcp.pop %v631
        %v636 = vmul.f32 %v626, %v635
        %v637 = vrcp.pop %v634
        %v638 = vmul.f32 %v628, %v637
        %v639 = vlaneseq
        %v640 = vshrl.u32 %v639, 7
        %v641 = vsub.s32 0, %v640
        %v642 = vrot.slane %v373, %v641
        %v644 = vsel %vm616, %v636, 0
        %v647 = vsel %vm616, %v638, 0
        %649 = vmatprep.subr.mxu0 0.0
        %650 = vmatpush1.msra.mxu0 0.0
        %651 = vmatprep.subr.mxu0 0.0
        %652 = vmatpush1.msra.mxu0 0.0
        %653 = vmatprep.subr.mxu0 0.0
        %654 = vmatpush1.msra.mxu0 0.0
        %655 = vmatprep.subr.mxu0 0.0
        %656 = vmatpush1.msra.mxu0 0.0
        %657 = vmatprep.subr.mxu0 0.0
        %658 = vmatpush1.msra.mxu0 0.0
        %659 = vmatprep.subr.mxu0 0.0
        %660 = vmatpush1.msra.mxu0 0.0
        %661 = vmatprep.subr.mxu0 0.0
        %662 = vmatpush1.msra.mxu0 0.0
        %663 = vmatprep.subr.mxu0 0.0
        %664 = vmatpush1.msra.mxu0 0.0
        %665 = vmatprep.subr.mxu0 0.0
        %666 = vmatpush1.msra.mxu0 0.0
        %667 = vmatprep.subr.mxu0 0.0
        %668 = vmatpush1.msra.mxu0 0.0
        %669 = vmatprep.subr.mxu0 0.0
        %670 = vmatpush1.msra.mxu0 0.0
        %671 = vmatprep.subr.mxu0 0.0
        %672 = vmatpush1.msra.mxu0 0.0
        %673 = vmatprep.subr.mxu0 0.0
        %674 = vmatpush1.msra.mxu0 0.0
        %675 = vmatprep.subr.mxu0 0.0
        %676 = vmatpush1.msra.mxu0 0.0
        %677 = vmatprep.subr.mxu0 0.0
        %678 = vmatpush1.msra.mxu0 %v364
        %679 = vmatprep.subr.mxu0 0.0
        %680 = vmatpush1.msra.mxu0 %v359
        %681 = vmatprep.subr.mxu0 0.0
        %682 = vmatpush2.msra.mxu0 0.0
        %683 = vmatprep.subr.mxu0 0.0
        %684 = vmatpush2.msra.mxu0 0.0
        %685 = vmatprep.subr.mxu0 0.0
        %686 = vmatpush2.msra.mxu0 0.0
        %687 = vmatprep.subr.mxu0 0.0
        %688 = vmatpush2.msra.mxu0 0.0
        %689 = vmatprep.subr.mxu0 0.0
        %690 = vmatpush2.msra.mxu0 0.0
        %691 = vmatprep.subr.mxu0 0.0
        %692 = vmatpush2.msra.mxu0 0.0
        %693 = vmatprep.subr.mxu0 0.0
        %694 = vmatpush2.msra.mxu0 0.0
        %695 = vmatprep.subr.mxu0 0.0
        %696 = vmatpush2.msra.mxu0 0.0
        %697 = vmatprep.subr.mxu0 0.0
        %698 = vmatpush2.msra.mxu0 0.0
        %699 = vmatprep.subr.mxu0 0.0
        %700 = vmatpush2.msra.mxu0 0.0
        %701 = vmatprep.subr.mxu0 0.0
        %702 = vmatpush2.msra.mxu0 0.0
        %703 = vmatprep.subr.mxu0 0.0
        %704 = vmatpush2.msra.mxu0 0.0
        %705 = vmatprep.subr.mxu0 0.0
        %706 = vmatpush2.msra.mxu0 0.0
        %707 = vmatprep.subr.mxu0 0.0
        %708 = vmatpush2.msra.mxu0 0.0
        %709 = vmatprep.subr.mxu0 0.0
        %710 = vmatpush2.msra.mxu0 0.0
        %711 = vmatprep.subr.mxu0 0.0
        %712 = vmatpush2.msra.mxu0 0.0
        %713 = vmatprep.mubr.f32.mxu0 0.0
        %714 = vmatmul.mubr.f32.gmra.mxu0 %v644
        %v715 = vpop.f32.mrf.mxu0
        %v716 = vadd.f32 %v642, %v715
        %v717 = vpop.f32.mrf.mxu0
        %718 = vmatprep.mubr.f32.mxu0 0.0
        %719 = vmatmul.mubr.f32.gmra.mxu0 %v647
        %v720 = vpop.f32.mrf.mxu0
        %v721 = vadd.f32 %v642, %v720
        %v722 = vpop.f32.mrf.mxu0
        %723 = vdwg.mxu0
        %v724 = vld [vmem:[%s5] sm:$0x1]
        %v725 = vld [vmem:[%s5 + $0x1] sm:$0x1]
        %v726 = vld [vmem:[%s5 + $0x2] sm:$0x1]
        %v727 = vld [vmem:[%s5 + $0x3] sm:$0x1]
        %v728 = vlaneseq
        %v729 = vshrl.u32 %v728, 7
        %v730 = vsub.s32 0, %v729
        %v731 = vrot.slane %v724, %v730
        %v732 = vmul.f32 %v716, %v731
        %v733 = vmul.f32 %v721, %v731
        %v734 = vlaneseq
        %v735 = vshrl.u32 %v734, 7
        %v736 = vsub.s32 0, %v735
        %v737 = vrot.slane %v725, %v736
        %v738 = vadd.f32 %v732, %v737
        %v739 = vadd.f32 %v733, %v737
        %v740 = vmax.f32 %v738, 0.0
        %v741 = vmax.f32 %v739, 0.0
        %v742 = vmul.f32 %v740, %v367
        %v743 = vmul.f32 %v741, %v368
        %v744 = vlaneseq
        %v745 = vshrl.u32 %v744, 7
        %v746 = vsub.s32 0, %v745
        %v747 = vrot.slane %v726, %v746
        %v748 = vmul.f32 %v742, %v747
        %v749 = vmul.f32 %v743, %v747
        %v750 = vlaneseq
        %v751 = vshrl.u32 %v750, 7
        %v752 = vsub.s32 0, %v751
        %v753 = vrot.slane %v727, %v752
        %v754 = vadd.f32 %v748, %v753
        %v755 = vadd.f32 %v749, %v753
        %v756 = vmax.f32 %v754, 0.0
        %v757 = vmax.f32 %v755, 0.0
        %s758 = sld [smem:[#allocation2]]
        %v759 = vstv %s758
        %v761 = vsel %vm381, %v374, 0
        %v764 = vsel %vm381, %v756, 0
        %v767 = vsel %vm381, %v757, 0
        %769 = vmatprep.subr.mxu0 0.0
        %770 = vmatpush1.xpose.msra.mxu0 0.0
        %771 = vmatprep.subr.mxu0 0.0
        %772 = vmatpush1.xpose.msra.mxu0 0.0
        %773 = vmatprep.subr.mxu0 0.0
        %774 = vmatpush1.xpose.msra.mxu0 0.0
        %775 = vmatprep.subr.mxu0 0.0
        %776 = vmatpush1.xpose.msra.mxu0 0.0
        %777 = vmatprep.subr.mxu0 0.0
        %778 = vmatpush1.xpose.msra.mxu0 0.0
        %779 = vmatprep.subr.mxu0 0.0
        %780 = vmatpush1.xpose.msra.mxu0 0.0
        %781 = vmatprep.subr.mxu0 0.0
        %782 = vmatpush1.xpose.msra.mxu0 0.0
        %783 = vmatprep.subr.mxu0 0.0
        %784 = vmatpush1.xpose.msra.mxu0 0.0
        %785 = vmatprep.subr.mxu0 0.0
        %786 = vmatpush1.xpose.msra.mxu0 0.0
        %787 = vmatprep.subr.mxu0 0.0
        %788 = vmatpush1.xpose.msra.mxu0 0.0
        %789 = vmatprep.subr.mxu0 0.0
        %790 = vmatpush1.xpose.msra.mxu0 0.0
        %791 = vmatprep.subr.mxu0 0.0
        %792 = vmatpush1.xpose.msra.mxu0 0.0
        %793 = vmatprep.subr.mxu0 0.0
        %794 = vmatpush1.xpose.msra.mxu0 0.0
        %795 = vmatprep.subr.mxu0 0.0
        %796 = vmatpush1.xpose.msra.mxu0 0.0
        %797 = vmatprep.subr.mxu0 0.0
        %798 = vmatpush1.xpose.msra.mxu0 %v767
        %799 = vmatprep.subr.mxu0 0.0
        %800 = vmatpush1.xpose.msra.mxu0 %v764
        %801 = vmatprep.subr.mxu0 0.0
        %802 = vmatpush2.xpose.msra.mxu0 0.0
        %803 = vmatprep.subr.mxu0 0.0
        %804 = vmatpush2.xpose.msra.mxu0 0.0
        %805 = vmatprep.subr.mxu0 0.0
        %806 = vmatpush2.xpose.msra.mxu0 0.0
        %807 = vmatprep.subr.mxu0 0.0
        %808 = vmatpush2.xpose.msra.mxu0 0.0
        %809 = vmatprep.subr.mxu0 0.0
        %810 = vmatpush2.xpose.msra.mxu0 0.0
        %811 = vmatprep.subr.mxu0 0.0
        %812 = vmatpush2.xpose.msra.mxu0 0.0
        %813 = vmatprep.subr.mxu0 0.0
        %814 = vmatpush2.xpose.msra.mxu0 0.0
        %815 = vmatprep.subr.mxu0 0.0
        %816 = vmatpush2.xpose.msra.mxu0 0.0
        %817 = vmatprep.subr.mxu0 0.0
        %818 = vmatpush2.xpose.msra.mxu0 0.0
        %819 = vmatprep.subr.mxu0 0.0
        %820 = vmatpush2.xpose.msra.mxu0 0.0
        %821 = vmatprep.subr.mxu0 0.0
        %822 = vmatpush2.xpose.msra.mxu0 0.0
        %823 = vmatprep.subr.mxu0 0.0
        %824 = vmatpush2.xpose.msra.mxu0 0.0
        %825 = vmatprep.subr.mxu0 0.0
        %826 = vmatpush2.xpose.msra.mxu0 0.0
        %827 = vmatprep.subr.mxu0 0.0
        %828 = vmatpush2.xpose.msra.mxu0 0.0
        %829 = vmatprep.subr.mxu0 0.0
        %830 = vmatpush2.xpose.msra.mxu0 0.0
        %831 = vmatprep.subr.mxu0 0.0
        %832 = vmatpush2.xpose.msra.mxu0 0.0
        %833 = vmatprep.mubr.f32.mxu0 0.0
        %834 = vmatmul.mubr.f32.gmra.mxu0 %v761
        %v835 = vpop.f32.mrf.mxu0
        %v836 = vadd.f32 %v759, %v835
        %v837 = vpop.f32.mrf.mxu0
        %838 = vdwg.mxu0
        %vm839 = vcmask 122880
        %840 = vst.msk [vmem:[%s271] sm:$0x1] %vm839, %v836
        %s841 = sand.u32 %s182, 1
        %s842 = scalar_lea.sflag [#allocation4], %s841
        %s843 = sand.u32 %s182, 1
        %s844 = scalar_lea.vmem [#allocation3], %s843
        // Predicated region
        $region49: #{tpu_custom_call.1} parent=47 // pred_check
          %p845 = pneg %p192
        $region50: #{tpu_custom_call.1} parent=47 // pred_check_branch
          %847 = sbr.rel (%p845) target = $region52
        $region51: #{tpu_custom_call.1} parent=47 // pred_region
          %s849 = ssub.s32 16, 16
          %850 = vsyncadd %s842, %s849
          %s851 = smul.addr %s22, 16
          %s852 = scalar_lea.hbm %s7, %s851
          %s854 = sshll.u32 %s844, 4
          %s855 = int_to_ptr.vmem [resolvable:$true] %s854
          %857 = dma.vmem_to_hbm [thread:$0]  %s855, 16, %s852, %s842
        $region52: #{tpu_custom_call.1} parent=47 // pred_fallthru
          _
      $region48: #{tpu_custom_call.1} parent=5 // pred_fallthru
        _
      %p858 = scmp.le.s32.totalorder 2, %s17
      // Predicated region
      $region53: #{tpu_custom_call.1} parent=5 // pred_check
        %p859 = pneg %p858
      $region54: #{tpu_custom_call.1} parent=5 // pred_check_branch
        %861 = sbr.rel (%p859) target = $region56
      $region55: #{tpu_custom_call.1} parent=5 // pred_region
        %s862 = ssub.s32 %s17, 2
        // Predicated region
        $region57: #{tpu_custom_call.1} parent=55 // pred_check
          %p863 = pneg %p198
        $region58: #{tpu_custom_call.1} parent=55 // pred_check_branch
          %865 = sbr.rel (%p863) target = $region60
        $region59: #{tpu_custom_call.1} parent=55 // pred_region
          %s866 = sand.u32 %s183, 1
          %s867 = scalar_lea.sflag [#allocation4], %s866
          %s868 = sand.u32 %s183, 1
          %s869 = scalar_lea.vmem [#allocation3], %s868
          %870 = dma.done %s867, 16
        $region60: #{tpu_custom_call.1} parent=55 // pred_fallthru
          _
      $region56: #{tpu_custom_call.1} parent=5 // pred_fallthru
        _
    $region6: #{tpu_custom_call.1} parent=1 // loop_footer
      %s21 = sadd.s32 1, %s17
    $region7: #{tpu_custom_call.1} parent=1 // loop_footer_branch
      %16 = sbr.rel target = $region3
    $region8: #{tpu_custom_call.1} parent=1 // loop_exit
      _
    %871 = vsyncpa [#allocation4], 1
    %s872 = scalar_lea.sflag [#allocation4], 1
    %873 = vsyncpa %s872, 1

</llo_original>
